<compile_context>
chip_gen: v5e
topology: v5e:2x2
jax: 0.10.0
libtpu: 0.0.40
codegen_flags: <defaults>
</compile_context>

<pallas_src>
import jax
import jax.numpy as jnp
from jax.experimental import pallas as pl
from jax.experimental.pallas import tpu as pltpu


def _round_up(x, m):
    return (x + m - 1) // m * m


def _channel_projection_kernel(w_ref, b_ref, x_ref, o_ref):
    # w_ref: (TM, S)  compute dtype | b_ref: (TM, 1) f32
    # x_ref: (S, TN)  compute dtype | o_ref: (TM, TN) out dtype
    y = jnp.dot(w_ref[...], x_ref[...], preferred_element_type=jnp.float32)
    o_ref[...] = (y + b_ref[...]).astype(o_ref.dtype)


def channel_projection(x, weight, bias, *, compute_dtype=jnp.bfloat16,
                       out_dtype=None, lane_tile=1024, p_tile=256,
                       vmem_budget_bytes=40 * 1024 * 1024):
    """y[b, p, c] = sum_s W[p, s] * x[b, s, c] + bias[p].

    x: (B, S, C), weight: (P, S), bias: (P,)  ->  (B, P, C)
    """
    B, S, C = x.shape
    P = weight.shape[0]
    if out_dtype is None:
        out_dtype = x.dtype
    csize = jnp.dtype(compute_dtype).itemsize
    osize = jnp.dtype(out_dtype).itemsize

    # ---- pred_len tiling: one tile when small, MXU-wide (256) otherwise -----
    P8 = _round_up(P, 8)
    TM = P8 if P8 <= 512 else p_tile
    P_pad = _round_up(P, TM)

    w_p = jnp.pad(weight, ((0, P_pad - P), (0, 0))).astype(compute_dtype)
    b_p = jnp.pad(bias, (0, P_pad - P)).reshape(P_pad, 1).astype(jnp.float32)

    def _vmem_bytes(tn):
        # Double-buffered inputs + outputs (+ lane-padded bias).
        return (2 * (TM * S + S * tn) * csize
                + 2 * TM * tn * osize
                + 2 * TM * 128 * 4)

    cost = pl.CostEstimate(
        flops=2 * B * P * S * C,
        transcendentals=0,
        bytes_accessed=(B * S * C * csize + P_pad * S * csize
                        + B * P_pad * C * osize),
    )

    def _compiler_params(n_parallel_axes, vmem_need):
        sem = ("parallel",) * n_parallel_axes + ("arbitrary",)
        vmem_limit = None
        if vmem_need > 12 * 1024 * 1024:
            vmem_limit = int(min(vmem_need + 8 * 1024 * 1024,
                                 48 * 1024 * 1024))
        return pltpu.CompilerParams(dimension_semantics=sem,
                                    vmem_limit_bytes=vmem_limit)

    if C % 128 == 0:
        # -------- Direct (B, S, C) -> (B, P, C): no XLA transposes ----------
        # TN must be a multiple of 128 that divides C (no x padding needed).
        candidates = [t for t in range(128, C + 1, 128) if C % t == 0]
        fitting = [t for t in candidates
                   if t <= lane_tile and _vmem_bytes(t) <= vmem_budget_bytes]
        TN = max(fitting) if fitting else 128
        # v7x megacore: if B == 1, keep >= 2 lane tiles so both TCs get work.
        if B == 1 and TN == C and C >= 256:
            smaller = [t for t in candidates if t < C]
            if smaller:
                TN = max(smaller)
        C_tiles = C // TN
        P_tiles = P_pad // TM

        x_c = x.astype(compute_dtype)       # cast only; no transpose, no pad

        y = pl.pallas_call(
            _channel_projection_kernel,
            out_shape=jax.ShapeDtypeStruct((B, P_pad, C), out_dtype),
            grid_spec=pltpu.PrefetchScalarGridSpec(
                num_scalar_prefetch=0,
                grid=(B, C_tiles, P_tiles),   # P innermost: X block resident
                in_specs=[
                    pl.BlockSpec((TM, S), lambda b, c, p: (p, 0)),
                    pl.BlockSpec((TM, 1), lambda b, c, p: (p, 0)),
                    pl.BlockSpec((pl.Squeezed(), S, TN),
                                 lambda b, c, p: (b, 0, c)),
                ],
                out_specs=pl.BlockSpec((pl.Squeezed(), TM, TN),
                                       lambda b, c, p: (b, p, c)),
            ),
            compiler_params=_compiler_params(2, _vmem_bytes(TN)),
            cost_estimate=cost,
        )(w_p, b_p, x_c)
        return y[:, :P, :]

    # -------- Flatten path: (B, S, C) -> (S, B*C) lane-dense GEMM ------------
    BC = B * C
    TN = lane_tile if BC >= lane_tile else _round_up(BC, 128)
    while TN > 128 and _vmem_bytes(TN) > vmem_budget_bytes:
        TN = max(128, _round_up(TN // 2, 128))
    # v7x megacore: keep >= 2 lane tiles when there is enough work to split.
    if _round_up(BC, TN) == TN and BC > 256:
        TN = max(128, _round_up((BC + 1) // 2, 128))
    BC_pad = _round_up(BC, TN)
    P_tiles = P_pad // TM

    # Cast BEFORE the transpose so the wrapper copy moves bf16, not f32.
    x2d = jnp.transpose(x.astype(compute_dtype), (1, 0, 2)).reshape(S, BC)
    x_p = jnp.pad(x2d, ((0, 0), (0, BC_pad - BC)))

    y2d = pl.pallas_call(
        _channel_projection_kernel,
        out_shape=jax.ShapeDtypeStruct((P_pad, BC_pad), out_dtype),
        grid_spec=pltpu.PrefetchScalarGridSpec(
            num_scalar_prefetch=0,
            grid=(BC_pad // TN, P_tiles),      # P innermost: X read from HBM once
            in_specs=[
                pl.BlockSpec((TM, S), lambda j, i: (i, 0)),   # weight tile
                pl.BlockSpec((TM, 1), lambda j, i: (i, 0)),   # bias tile
                pl.BlockSpec((S, TN), lambda j, i: (0, j)),   # x tile (resident)
            ],
            out_specs=pl.BlockSpec((TM, TN), lambda j, i: (i, j)),
        ),
        compiler_params=_compiler_params(1, _vmem_bytes(TN)),
        cost_estimate=cost,
    )(w_p, b_p, x_p)

    # (P_pad, BC_pad) -> (B, P, C)
    y = y2d[:P, :BC].reshape(P, B, C)
    return jnp.transpose(y, (1, 0, 2))


if __name__ == "__main__":
    key = jax.random.PRNGKey(0)
    kw, kb, kx1, kx2 = jax.random.split(key, 4)

    # Shapes consistent with ChannelProjection.forward: (batch, seq_len, channels)
    B, S, P = 2, 8, 12     # batch, seq_len, pred_len

    # Deterministic nn.Linear-style init: U(-1/sqrt(seq_len), 1/sqrt(seq_len))
    bound = 1.0 / (S ** 0.5)
    weight = jax.random.uniform(kw, (P, S), minval=-bound, maxval=bound,
                                dtype=jnp.float32)
    bias = jax.random.uniform(kb, (P,), minval=-bound, maxval=bound,
                              dtype=jnp.float32)

    # C=32 exercises the flatten path; C=128 exercises the direct 3-D path.
    for C, kk in ((32, kx1), (128, kx2)):
        x = jax.random.normal(kk, (B, S, C), dtype=jnp.float32)
        y = jax.block_until_ready(channel_projection(x, weight, bias))
        assert y.shape == (B, P, C)

        # Reference along the same bf16-feed / f32-accumulate path the MXU uses.
        y_bf = (jnp.einsum("ps,bsc->bpc",
                           weight.astype(jnp.bfloat16).astype(jnp.float32),
                           x.astype(jnp.bfloat16).astype(jnp.float32),
                           precision=jax.lax.Precision.HIGHEST)
                + bias[None, :, None])
        assert jnp.allclose(y.astype(jnp.float32), y_bf, atol=1e-3, rtol=1e-3)

        # Loose sanity check against the full-f32 reference (bf16 rounding only).
        y_f32 = (jnp.einsum("ps,bsc->bpc", weight, x,
                            precision=jax.lax.Precision.HIGHEST)
                 + bias[None, :, None])
        assert jnp.allclose(y.astype(jnp.float32), y_f32, atol=5e-2, rtol=5e-2)

    print("KERNEL_OK")
</pallas_src>

<mosaic_0001>
module attributes {stable_mosaic.version = 11 : i64} {
  func.func @_channel_projection_kernel(%arg0: i32, %arg1: i32, %arg2: memref<16x8xbf16, #tpu.memory_space<vmem>>, %arg3: memref<16x1xf32, #tpu.memory_space<vmem>>, %arg4: memref<8x128xbf16, #tpu.memory_space<vmem>>, %arg5: memref<16x128xf32, #tpu.memory_space<vmem>>) attributes {dimension_semantics = [#tpu.dimension_semantics<parallel>, #tpu.dimension_semantics<arbitrary>], iteration_bounds = array<i64: 1, 1>, scalar_prefetch = 0 : i64, scratch_operands = 0 : i64, tpu.core_type = #tpu.core_type<tc>, window_params = [{transform_indices = @transform_0, window_bounds = array<i64: 16, 8>}, {transform_indices = @transform_1, window_bounds = array<i64: 16, 1>}, {transform_indices = @transform_2, window_bounds = array<i64: 8, 128>}, {transform_indices = @transform_3, window_bounds = array<i64: 16, 128>}]} {
    %c0 = arith.constant 0 : index
    %c0_0 = arith.constant 0 : index
    %0 = vector.load %arg2[%c0, %c0_0] : memref<16x8xbf16, #tpu.memory_space<vmem>>, vector<16x8xbf16>
    %c0_1 = arith.constant 0 : index
    %c0_2 = arith.constant 0 : index
    %1 = vector.load %arg4[%c0_1, %c0_2] : memref<8x128xbf16, #tpu.memory_space<vmem>>, vector<8x128xbf16>
    %cst = arith.constant dense<0.000000e+00> : vector<16x128xf32>
    %2 = tpu.matmul %0, %1, %cst {dimension_numbers = #tpu.dot_dimension_numbers<[1], [0], [0], [1], [0, 0, 1, 1], [], []>} : vector<16x8xbf16>, vector<8x128xbf16>, vector<16x128xf32> -> vector<16x128xf32>
    %c0_3 = arith.constant 0 : index
    %c0_4 = arith.constant 0 : index
    %3 = vector.load %arg3[%c0_3, %c0_4] : memref<16x1xf32, #tpu.memory_space<vmem>>, vector<16x1xf32>
    %4 = vector.broadcast %3 : vector<16x1xf32> to vector<16x128xf32>
    %5 = arith.addf %2, %4 : vector<16x128xf32>
    %c0_5 = arith.constant 0 : index
    %c0_6 = arith.constant 0 : index
    %6 = vector.load %arg5[%c0_5, %c0_6] : memref<16x128xf32, #tpu.memory_space<vmem>>, vector<16x128xf32>
    tpu.vector_store %arg5[%c0_5, %c0_6], %5 {strides = array<i32>} : memref<16x128xf32, #tpu.memory_space<vmem>>, vector<16x128xf32>,
    return
  }
  func.func @transform_0(%arg0: i32, %arg1: i32) -> (i32, i32) {
    %c0_i32 = arith.constant 0 : i32
    %c0_i32_0 = arith.constant 0 : i32
    return %arg1, %c0_i32 : i32, i32
  }
  func.func @transform_1(%arg0: i32, %arg1: i32) -> (i32, i32) {
    %c0_i32 = arith.constant 0 : i32
    %c0_i32_0 = arith.constant 0 : i32
    return %arg1, %c0_i32 : i32, i32
  }
  func.func @transform_2(%arg0: i32, %arg1: i32) -> (i32, i32) {
    %c0_i32 = arith.constant 0 : i32
    %c0_i32_0 = arith.constant 0 : i32
    return %c0_i32, %arg0 : i32, i32
  }
  func.func @transform_3(%arg0: i32, %arg1: i32) -> (i32, i32) {
    %c0_i32 = arith.constant 0 : i32
    return %arg1, %arg0 : i32, i32
  }
}

</mosaic_0001>

<llo_original>
// kernel: tpu_custom_call.1
$region0: #{tpu_custom_call.1}
  #allocation0 [shape = 'u32[]', space=smem, size = 0x4, offset = 0x4, fixed_abs, tag = 'smem constant byte address 0x4 - core index']
  #allocation1 [shape = 'u32[72,128]{1,0:T(1,128)}', space=vmem, size = 0x9000, scoped, tag = 'internal scratch']
  %s0 = inlined_call_operand.vmem [shape: bf16[16,8], index: 0, kind: input, shape index: {}]
  %s1 = inlined_call_operand.vmem [shape: f32[16,1], index: 1, kind: input, shape index: {}]
  %s2 = inlined_call_operand.vmem [shape: bf16[8,128], index: 2, kind: input, shape index: {}]
  %s3 = inlined_call_operand.hbm [shape: f32[16,128], index: 3, kind: output, shape index: {}]
  %s4 = sld [smem:[#allocation0]]
  $region22: #{tpu_custom_call.1} parent=0
    _
  %s6 = ssub.s32 1, %s4
  %s7 = scalar_select 0, %s6, %s4
  $region1: #{tpu_custom_call.1} parent=0
    #allocation2 [shape = 'u8[8192]{0}', space=vmem, size = 0x2000, scoped, tag = 'output window, operand 0, single buffered']
    #allocation3 [shape = 's32[1]{0}', space=sflag, size = 0x4, scoped, tag = 'scoped memory for tpu_custom_call.1']
    %8 = vsyncpa [#allocation3], 0
    // Predicated region
    $region2: #{tpu_custom_call.1} parent=1 // pred_check
      _
    $region3: #{tpu_custom_call.1} parent=1 // pred_check_branch
      %10 = sbr.rel (0) target = $region5
    $region4: #{tpu_custom_call.1} parent=1 // pred_region
      _
    $region5: #{tpu_custom_call.1} parent=1 // pred_fallthru
      _
    // Predicated region
    $region6: #{tpu_custom_call.1} parent=1 // pred_check
      _
    $region7: #{tpu_custom_call.1} parent=1 // pred_check_branch
      %12 = sbr.rel (0) target = $region9
    $region8: #{tpu_custom_call.1} parent=1 // pred_region
      _
    $region9: #{tpu_custom_call.1} parent=1 // pred_fallthru
      _
    // Predicated region
    $region10: #{tpu_custom_call.1} parent=1 // pred_check
      _
    $region11: #{tpu_custom_call.1} parent=1 // pred_check_branch
      %14 = sbr.rel (0) target = $region13
    $region12: #{tpu_custom_call.1} parent=1 // pred_region
      _
    $region13: #{tpu_custom_call.1} parent=1 // pred_fallthru
      _
    %v16 = vld [vmem:[%s0] sm:$0xf]
    %v17 = vld [vmem:[%s0 + $0x4] sm:$0xf]
    %v18 = vld [vmem:[%s2] sm:$0xf]
    %v19 = vld [vmem:[%s1] sm:$0xff]
    %v20 = vld [vmem:[%s1 + $0x8] sm:$0xff]
    %22 = vset.pattern.permute.xlu0 0
    %23 = vperm.xlu0 %22, %v19
    %v24 = vpop.permute.xlu0 %23
    %27 = vset.pattern.permute.xlu0 0
    %28 = vperm.xlu0 %27, %v20
    %v29 = vpop.permute.xlu0 %28
    %v33 = vunpack.c.l.b16 %v16
    %v34 = vunpack.c.l.b16 %v17
    %v35 = vpack.c.b16 %v34, %v33
    %vm36 = vcmask 64512
    %v38 = vsel %vm36, %v35, 0
    %vm40 = vcmask 1043456
    %v42 = vsel %vm40, %v18, 0
    %44 = vmatpush.bf16.msra.mxu0 0
    %45 = vmatpush.bf16.msra.mxu0 0
    %46 = vmatpush.bf16.msra.mxu0 0
    %47 = vmatpush.bf16.msra.mxu0 0
    %48 = vmatpush.bf16.msra.mxu0 0
    %49 = vmatpush.bf16.msra.mxu0 0
    %50 = vmatpush.bf16.msra.mxu0 0
    %51 = vmatpush.bf16.msra.mxu0 %v42
    %52 = vmatmul.bf16.gmra.mxu0 %v38
    %v53 = vpop.f32.mrf.mxu0
    %v54 = vadd.f32 %v24, %v53
    %v55 = vpop.f32.mrf.mxu0
    %v56 = vadd.f32 %v29, %v55
    %57 = vdwg.mxu0
    %58 = vst [vmem:[#allocation2] sm:$0xff] %v54
    %59 = vst [vmem:[#allocation2 + $0x8] sm:$0xff] %v56
    // Predicated region
    $region14: #{tpu_custom_call.1} parent=1 // pred_check
      _
    $region15: #{tpu_custom_call.1} parent=1 // pred_check_branch
      %61 = sbr.rel (0) target = $region17
    $region16: #{tpu_custom_call.1} parent=1 // pred_region
      %63 = vsyncadd [#allocation3], 0
      %s64 = sshll.u32 [#allocation2], 4
      %s65 = int_to_ptr.vmem [resolvable:$true] %s64
      %s66 = sshll.u32 %s3, 4
      %s67 = int_to_ptr.hbm [resolvable:$true] %s66
      %72 = dma.vmem_to_hbm [thread:$0]  %s65, 256, %s67, [#allocation3], 128, 128, 8
    $region17: #{tpu_custom_call.1} parent=1 // pred_fallthru
      _
    // Predicated region
    $region18: #{tpu_custom_call.1} parent=1 // pred_check
      _
    $region19: #{tpu_custom_call.1} parent=1 // pred_check_branch
      %74 = sbr.rel (0) target = $region21
    $region20: #{tpu_custom_call.1} parent=1 // pred_region
      %76 = dma.done [#allocation3], 256
    $region21: #{tpu_custom_call.1} parent=1 // pred_fallthru
      _
    %77 = vsyncpa [#allocation3], 1

</llo_original>
